<compile_context>
chip_gen: v7x
topology: tpu7x:2x2x1
jax: 0.10.0
libtpu: 0.0.40
codegen_flags: <defaults>
</compile_context>

<pallas_src>
import functools

import jax
import jax.numpy as jnp
from jax.experimental import pallas as pl
from jax.experimental.pallas import tpu as pltpu


# --------------------------------------------------------------------------- #
# Kernel
# --------------------------------------------------------------------------- #
def ae_kernel(x_ref,
              w1_ref, b1_ref,
              w2_ref, b2_ref,
              w3_ref, b3_ref,
              w4_ref, b4_ref,
              o_ref):
    """Fused 4 x (matmul + bias + ReLU) on one batch tile.

    x / weights arrive in the streaming dtype (bf16); matmuls accumulate in
    f32 on the MXU, bias-add + ReLU happen in f32, and activations are cast
    back to the streaming dtype before feeding the next matmul.
    """
    cdt = w1_ref.dtype
    x = x_ref[...]

    # encoder hidden: (TB, F) @ (F, 128)
    h = jnp.dot(x, w1_ref[...], preferred_element_type=jnp.float32) + b1_ref[...]
    h = jnp.maximum(h, 0.0).astype(cdt)

    # encoder output (code, 64 zero-padded to 128): (TB, 128) @ (128, 128)
    c = jnp.dot(h, w2_ref[...], preferred_element_type=jnp.float32) + b2_ref[...]
    c = jnp.maximum(c, 0.0).astype(cdt)

    # decoder hidden (padded contraction): (TB, 128) @ (128, 128)
    d = jnp.dot(c, w3_ref[...], preferred_element_type=jnp.float32) + b3_ref[...]
    d = jnp.maximum(d, 0.0).astype(cdt)

    # decoder output (reconstruction): (TB, 128) @ (128, F)
    r = jnp.dot(d, w4_ref[...], preferred_element_type=jnp.float32) + b4_ref[...]
    r = jnp.maximum(r, 0.0)

    o_ref[...] = r.astype(o_ref.dtype)


# --------------------------------------------------------------------------- #
# Wrapper helpers
# --------------------------------------------------------------------------- #
def _round_up(x, m):
    return ((x + m - 1) // m) * m


def _choose_tile_b(batch):
    """Pick the batch tile: 256-aligned, capped at 1024, >=2 grid steps if possible."""
    if batch >= 2048:
        return 1024
    if batch >= 512:
        # half the batch, rounded to a 256 multiple -> fills v6e/v7x MXU rows
        # (also a 128 multiple for v5e) and gives >= 2 grid steps for v7x's 2 TCs.
        return max(256, (batch // 2) // 256 * 256)
    # small batch: single tile, 16-row aligned (bf16 sublane packing)
    return _round_up(max(batch, 16), 16)


def _pad_params(params, compute_dtype):
    """Zero-pad the 64-wide bottleneck to 128 and cast weights to the streaming dtype."""
    (w1, b1), (w2, b2), (w3, b3), (w4, b4) = params
    h2 = w2.shape[1]
    h2p = _round_up(h2, 128)
    if h2p != h2:
        w2 = jnp.pad(w2, ((0, 0), (0, h2p - h2)))   # extra output cols -> 0
        b2 = jnp.pad(b2, ((0, 0), (0, h2p - h2)))   # extra biases      -> 0
        w3 = jnp.pad(w3, ((0, h2p - h2), (0, 0)))   # extra contraction rows -> 0
    cast = lambda a: a.astype(compute_dtype)
    f32 = lambda a: a.astype(jnp.float32)
    return ((cast(w1), f32(b1)), (cast(w2), f32(b2)),
            (cast(w3), f32(b3)), (cast(w4), f32(b4)))


def _vmem_limit_bytes(tile_b, f, h1, h2p, compute_dtype):
    e = jnp.dtype(compute_dtype).itemsize
    io = 2 * 2 * tile_b * f * e                              # x + out, double-buffered
    w = 2 * e * (f * h1 + h1 * h2p + h2p * h1 + h1 * f)      # resident weights
    b = 2 * 4 * (h1 + h2p + h1 + f)                          # resident biases (f32)
    live = 4 * tile_b * (h1 + h2p + h1 + f)                  # f32 live intermediates
    total = io + w + b + live + (4 << 20)                    # headroom
    # floor at the default scoped limits, cap at v7x's 64 MiB physical VMEM
    return int(min(max(total, 32 << 20), 64 << 20))


# --------------------------------------------------------------------------- #
# Forward pass
# --------------------------------------------------------------------------- #
@functools.partial(jax.jit, static_argnames=("tile_b", "compute_dtype"))
def ae_forward(x, params, *, tile_b=None, compute_dtype=jnp.bfloat16):
    """Run the AE forward pass. x: (B, F). Returns (B, F) in compute_dtype."""
    B, F = x.shape
    if tile_b is None:
        tile_b = _choose_tile_b(B)
    tile_b = _round_up(min(tile_b, 1024), 16)   # cap: >1024 rows only inflates spills

    (w1, b1), (w2, b2), (w3, b3), (w4, b4) = _pad_params(params, compute_dtype)
    H1 = w1.shape[1]     # 128
    H2p = w2.shape[1]    # 128 (64 padded)

    # Pad ragged batches up to the tile size (never shrink the tile).
    B_pad = _round_up(B, tile_b)
    x_c = x.astype(compute_dtype)
    if B_pad != B:
        x_c = jnp.pad(x_c, ((0, B_pad - B), (0, 0)))

    grid = (B_pad // tile_b,)

    # Constant index_map => block index never changes, so Pallas skips re-DMA
    # of the (small, ~320 KiB) weights/biases after the first grid step.
    full = lambda shape: pl.BlockSpec(shape, lambda i: (0, 0))

    out = pl.pallas_call(
        ae_kernel,
        out_shape=jax.ShapeDtypeStruct((B_pad, F), compute_dtype),
        grid_spec=pltpu.PrefetchScalarGridSpec(
            num_scalar_prefetch=0,
            grid=grid,
            in_specs=[
                pl.BlockSpec((tile_b, F), lambda i: (i, 0)),   # x tile
                full((F, H1)), full((1, H1)),                  # encoder hidden
                full((H1, H2p)), full((1, H2p)),               # encoder output (padded)
                full((H2p, H1)), full((1, H1)),                # decoder hidden (padded)
                full((H1, F)), full((1, F)),                   # decoder output
            ],
            out_specs=pl.BlockSpec((tile_b, F), lambda i: (i, 0)),
        ),
        compiler_params=pltpu.CompilerParams(
            dimension_semantics=("parallel",),   # shards batch tiles across v7x's 2 TCs
            vmem_limit_bytes=_vmem_limit_bytes(tile_b, F, H1, H2p, compute_dtype),
        ),
    )(x_c, w1, b1, w2, b2, w3, b3, w4, b4)

    if B_pad != B:
        out = out[:B]
    return out


# --------------------------------------------------------------------------- #
# Init + references
# --------------------------------------------------------------------------- #
def init_params(key, input_shape):
    """Deterministic init mirroring nn.Linear shapes (stored as (in, out))."""
    dims = [(input_shape, 128), (128, 64), (64, 128), (128, input_shape)]
    params = []
    for i, (fin, fout) in enumerate(dims):
        kw, kb = jax.random.split(jax.random.fold_in(key, i))
        bound = 1.0 / jnp.sqrt(fin)
        w = jax.random.uniform(kw, (fin, fout), jnp.float32, -bound, bound)
        b = jax.random.uniform(kb, (1, fout), jnp.float32, -bound, bound)
        params.append((w, b))
    return params


def ae_reference(x, params, compute_dtype=jnp.float32):
    """Plain-JAX reference of the PyTorch forward pass.

    With compute_dtype=bfloat16 it applies the same cast points as the kernel
    (bf16 matmul inputs, f32 accumulation / bias-add / ReLU).
    """
    h = x.astype(compute_dtype)
    for (w, b) in params:
        acc = jnp.dot(h, w.astype(compute_dtype),
                      preferred_element_type=jnp.float32)
        h = jnp.maximum(acc + b.astype(jnp.float32), 0.0).astype(compute_dtype)
    return h


# --------------------------------------------------------------------------- #
# Demo / correctness check
# --------------------------------------------------------------------------- #
if __name__ == "__main__":
    key = jax.random.PRNGKey(0)
    B, F = 40, 256                 # small demo; B=40 exercises the ragged-batch padding path

    kx, kp = jax.random.split(key)
    x = jax.random.normal(kx, (B, F), jnp.float32)
    params = init_params(kp, F)

    out = jax.block_until_ready(ae_forward(x, params))
    assert out.shape == (B, F)

    # Reference with identical bf16 streaming / f32 accumulation cast points.
    ref_bf16 = ae_reference(x, params, compute_dtype=jnp.bfloat16)
    assert jnp.allclose(out.astype(jnp.float32), ref_bf16.astype(jnp.float32),
                        atol=1e-2, rtol=1e-2), "mismatch vs bf16 reference"

    # Sanity check against the pure-f32 PyTorch-equivalent forward (bf16 tolerance).
    ref_f32 = ae_reference(x, params)
    assert jnp.allclose(out.astype(jnp.float32), ref_f32,
                        atol=5e-2, rtol=5e-2), "mismatch vs f32 reference"

    print("KERNEL_OK")
</pallas_src>

<mosaic_0001>
module attributes {stable_mosaic.version = 11 : i64} {
  func.func @ae_kernel(%arg0: i32, %arg1: memref<48x256xbf16, #tpu.memory_space<vmem>>, %arg2: memref<256x128xbf16, #tpu.memory_space<vmem>>, %arg3: memref<1x128xf32, #tpu.memory_space<vmem>>, %arg4: memref<128x128xbf16, #tpu.memory_space<vmem>>, %arg5: memref<1x128xf32, #tpu.memory_space<vmem>>, %arg6: memref<128x128xbf16, #tpu.memory_space<vmem>>, %arg7: memref<1x128xf32, #tpu.memory_space<vmem>>, %arg8: memref<128x256xbf16, #tpu.memory_space<vmem>>, %arg9: memref<1x256xf32, #tpu.memory_space<vmem>>, %arg10: memref<48x256xbf16, #tpu.memory_space<vmem>>) attributes {dimension_semantics = [#tpu.dimension_semantics<parallel>], iteration_bounds = array<i64: 1>, scalar_prefetch = 0 : i64, scratch_operands = 0 : i64, tpu.core_type = #tpu.core_type<tc>, window_params = [{transform_indices = @transform_0, window_bounds = array<i64: 48, 256>}, {pipeline_mode = #tpu.pipeline_mode<synchronous>, transform_indices = @transform_1, window_bounds = array<i64: 256, 128>}, {pipeline_mode = #tpu.pipeline_mode<synchronous>, transform_indices = @transform_2, window_bounds = array<i64: 1, 128>}, {pipeline_mode = #tpu.pipeline_mode<synchronous>, transform_indices = @transform_3, window_bounds = array<i64: 128, 128>}, {pipeline_mode = #tpu.pipeline_mode<synchronous>, transform_indices = @transform_4, window_bounds = array<i64: 1, 128>}, {pipeline_mode = #tpu.pipeline_mode<synchronous>, transform_indices = @transform_5, window_bounds = array<i64: 128, 128>}, {pipeline_mode = #tpu.pipeline_mode<synchronous>, transform_indices = @transform_6, window_bounds = array<i64: 1, 128>}, {pipeline_mode = #tpu.pipeline_mode<synchronous>, transform_indices = @transform_7, window_bounds = array<i64: 128, 256>}, {pipeline_mode = #tpu.pipeline_mode<synchronous>, transform_indices = @transform_8, window_bounds = array<i64: 1, 256>}, {transform_indices = @transform_9, window_bounds = array<i64: 48, 256>}]} {
    %c0 = arith.constant 0 : index
    %c0_0 = arith.constant 0 : index
    %0 = vector.load %arg1[%c0, %c0_0] : memref<48x256xbf16, #tpu.memory_space<vmem>>, vector<48x256xbf16>
    %c0_1 = arith.constant 0 : index
    %c0_2 = arith.constant 0 : index
    %1 = vector.load %arg2[%c0_1, %c0_2] : memref<256x128xbf16, #tpu.memory_space<vmem>>, vector<256x128xbf16>
    %cst = arith.constant dense<0.000000e+00> : vector<48x128xf32>
    %2 = tpu.matmul %0, %1, %cst {dimension_numbers = #tpu.dot_dimension_numbers<[1], [0], [0], [1], [0, 0, 1, 1], [], []>} : vector<48x256xbf16>, vector<256x128xbf16>, vector<48x128xf32> -> vector<48x128xf32>
    %c0_3 = arith.constant 0 : index
    %c0_4 = arith.constant 0 : index
    %3 = vector.load %arg3[%c0_3, %c0_4] : memref<1x128xf32, #tpu.memory_space<vmem>>, vector<1x128xf32>
    %4 = vector.broadcast %3 : vector<1x128xf32> to vector<48x128xf32>
    %5 = arith.addf %2, %4 : vector<48x128xf32>
    %cst_5 = arith.constant 0.000000e+00 : f32
    %6 = vector.broadcast %cst_5 : f32 to vector<48x128xf32>
    %7 = arith.maximumf %5, %6 : vector<48x128xf32>
    %8 = arith.truncf %7 : vector<48x128xf32> to vector<48x128xbf16>
    %c0_6 = arith.constant 0 : index
    %c0_7 = arith.constant 0 : index
    %9 = vector.load %arg4[%c0_6, %c0_7] : memref<128x128xbf16, #tpu.memory_space<vmem>>, vector<128x128xbf16>
    %cst_8 = arith.constant dense<0.000000e+00> : vector<48x128xf32>
    %10 = tpu.matmul %8, %9, %cst_8 {dimension_numbers = #tpu.dot_dimension_numbers<[1], [0], [0], [1], [0, 0, 1, 1], [], []>} : vector<48x128xbf16>, vector<128x128xbf16>, vector<48x128xf32> -> vector<48x128xf32>
    %c0_9 = arith.constant 0 : index
    %c0_10 = arith.constant 0 : index
    %11 = vector.load %arg5[%c0_9, %c0_10] : memref<1x128xf32, #tpu.memory_space<vmem>>, vector<1x128xf32>
    %12 = vector.broadcast %11 : vector<1x128xf32> to vector<48x128xf32>
    %13 = arith.addf %10, %12 : vector<48x128xf32>
    %cst_11 = arith.constant 0.000000e+00 : f32
    %14 = vector.broadcast %cst_11 : f32 to vector<48x128xf32>
    %15 = arith.maximumf %13, %14 : vector<48x128xf32>
    %16 = arith.truncf %15 : vector<48x128xf32> to vector<48x128xbf16>
    %c0_12 = arith.constant 0 : index
    %c0_13 = arith.constant 0 : index
    %17 = vector.load %arg6[%c0_12, %c0_13] : memref<128x128xbf16, #tpu.memory_space<vmem>>, vector<128x128xbf16>
    %cst_14 = arith.constant dense<0.000000e+00> : vector<48x128xf32>
    %18 = tpu.matmul %16, %17, %cst_14 {dimension_numbers = #tpu.dot_dimension_numbers<[1], [0], [0], [1], [0, 0, 1, 1], [], []>} : vector<48x128xbf16>, vector<128x128xbf16>, vector<48x128xf32> -> vector<48x128xf32>
    %c0_15 = arith.constant 0 : index
    %c0_16 = arith.constant 0 : index
    %19 = vector.load %arg7[%c0_15, %c0_16] : memref<1x128xf32, #tpu.memory_space<vmem>>, vector<1x128xf32>
    %20 = vector.broadcast %19 : vector<1x128xf32> to vector<48x128xf32>
    %21 = arith.addf %18, %20 : vector<48x128xf32>
    %cst_17 = arith.constant 0.000000e+00 : f32
    %22 = vector.broadcast %cst_17 : f32 to vector<48x128xf32>
    %23 = arith.maximumf %21, %22 : vector<48x128xf32>
    %24 = arith.truncf %23 : vector<48x128xf32> to vector<48x128xbf16>
    %c0_18 = arith.constant 0 : index
    %c0_19 = arith.constant 0 : index
    %25 = vector.load %arg8[%c0_18, %c0_19] : memref<128x256xbf16, #tpu.memory_space<vmem>>, vector<128x256xbf16>
    %cst_20 = arith.constant dense<0.000000e+00> : vector<48x256xf32>
    %26 = tpu.matmul %24, %25, %cst_20 {dimension_numbers = #tpu.dot_dimension_numbers<[1], [0], [0], [1], [0, 0, 1, 1], [], []>} : vector<48x128xbf16>, vector<128x256xbf16>, vector<48x256xf32> -> vector<48x256xf32>
    %c0_21 = arith.constant 0 : index
    %c0_22 = arith.constant 0 : index
    %27 = vector.load %arg9[%c0_21, %c0_22] : memref<1x256xf32, #tpu.memory_space<vmem>>, vector<1x256xf32>
    %28 = vector.broadcast %27 : vector<1x256xf32> to vector<48x256xf32>
    %29 = arith.addf %26, %28 : vector<48x256xf32>
    %cst_23 = arith.constant 0.000000e+00 : f32
    %30 = vector.broadcast %cst_23 : f32 to vector<48x256xf32>
    %31 = arith.maximumf %29, %30 : vector<48x256xf32>
    %32 = arith.truncf %31 : vector<48x256xf32> to vector<48x256xbf16>
    %c0_24 = arith.constant 0 : index
    %c0_25 = arith.constant 0 : index
    %33 = vector.load %arg10[%c0_24, %c0_25] : memref<48x256xbf16, #tpu.memory_space<vmem>>, vector<48x256xbf16>
    tpu.vector_store %arg10[%c0_24, %c0_25], %32 {strides = array<i32>} : memref<48x256xbf16, #tpu.memory_space<vmem>>, vector<48x256xbf16>,
    return
  }
  func.func @transform_0(%arg0: i32) -> (i32, i32) {
    %c0_i32 = arith.constant 0 : i32
    %c0_i32_0 = arith.constant 0 : i32
    return %arg0, %c0_i32 : i32, i32
  }
  func.func @transform_1(%arg0: i32) -> (i32, i32) {
    %c0_i32 = arith.constant 0 : i32
    %c0_i32_0 = arith.constant 0 : i32
    %c0_i32_1 = arith.constant 0 : i32
    return %c0_i32, %c0_i32_0 : i32, i32
  }
  func.func @transform_2(%arg0: i32) -> (i32, i32) {
    %c0_i32 = arith.constant 0 : i32
    %c0_i32_0 = arith.constant 0 : i32
    %c0_i32_1 = arith.constant 0 : i32
    return %c0_i32, %c0_i32_0 : i32, i32
  }
  func.func @transform_3(%arg0: i32) -> (i32, i32) {
    %c0_i32 = arith.constant 0 : i32
    %c0_i32_0 = arith.constant 0 : i32
    %c0_i32_1 = arith.constant 0 : i32
    return %c0_i32, %c0_i32_0 : i32, i32
  }
  func.func @transform_4(%arg0: i32) -> (i32, i32) {
    %c0_i32 = arith.constant 0 : i32
    %c0_i32_0 = arith.constant 0 : i32
    %c0_i32_1 = arith.constant 0 : i32
    return %c0_i32, %c0_i32_0 : i32, i32
  }
  func.func @transform_5(%arg0: i32) -> (i32, i32) {
    %c0_i32 = arith.constant 0 : i32
    %c0_i32_0 = arith.constant 0 : i32
    %c0_i32_1 = arith.constant 0 : i32
    return %c0_i32, %c0_i32_0 : i32, i32
  }
  func.func @transform_6(%arg0: i32) -> (i32, i32) {
    %c0_i32 = arith.constant 0 : i32
    %c0_i32_0 = arith.constant 0 : i32
    %c0_i32_1 = arith.constant 0 : i32
    return %c0_i32, %c0_i32_0 : i32, i32
  }
  func.func @transform_7(%arg0: i32) -> (i32, i32) {
    %c0_i32 = arith.constant 0 : i32
    %c0_i32_0 = arith.constant 0 : i32
    %c0_i32_1 = arith.constant 0 : i32
    return %c0_i32, %c0_i32_0 : i32, i32
  }
  func.func @transform_8(%arg0: i32) -> (i32, i32) {
    %c0_i32 = arith.constant 0 : i32
    %c0_i32_0 = arith.constant 0 : i32
    %c0_i32_1 = arith.constant 0 : i32
    return %c0_i32, %c0_i32_0 : i32, i32
  }
  func.func @transform_9(%arg0: i32) -> (i32, i32) {
    %c0_i32 = arith.constant 0 : i32
    %c0_i32_0 = arith.constant 0 : i32
    return %arg0, %c0_i32 : i32, i32
  }
}

</mosaic_0001>

<llo_original>
// kernel: ae_forward.1
$region0: #{ae_forward.1}
  #allocation0 [shape = 'u32[]', space=smem, size = 0x4, offset = 0x4, fixed_abs, tag = 'smem constant byte address 0x4 - core index']
  #allocation1 [shape = 'u32[144,128]{1,0:T(1,128)}', space=vmem, size = 0x12000, scoped, tag = 'internal scratch']
  %s0 = inlined_call_operand.vmem [shape: bf16[48,256], index: 0, kind: input, shape index: {}]
  %s1 = inlined_call_operand.vmem [shape: bf16[256,128], index: 1, kind: input, shape index: {}]
  %s2 = inlined_call_operand.vmem [shape: f32[1,128], index: 2, kind: input, shape index: {}]
  %s3 = inlined_call_operand.vmem [shape: bf16[128,128], index: 3, kind: input, shape index: {}]
  %s4 = inlined_call_operand.vmem [shape: f32[1,128], index: 4, kind: input, shape index: {}]
  %s5 = inlined_call_operand.vmem [shape: bf16[128,128], index: 5, kind: input, shape index: {}]
  %s6 = inlined_call_operand.vmem [shape: f32[1,128], index: 6, kind: input, shape index: {}]
  %s7 = inlined_call_operand.vmem [shape: bf16[128,256], index: 7, kind: input, shape index: {}]
  %s8 = inlined_call_operand.vmem [shape: f32[1,256], index: 8, kind: input, shape index: {}]
  %s9 = inlined_call_operand.vmem [shape: bf16[48,256], index: 9, kind: output, shape index: {}]
  %s10 = sld [smem:[#allocation0]]
  $region46: #{ae_forward.1} parent=0
    _
  %s12 = ssub.s32 1, %s10
  %s13 = scalar_select 0, %s12, %s10
  // Predicated region
  $region2: #{ae_forward.1} parent=0 // pred_check
    _
  $region3: #{ae_forward.1} parent=0 // pred_check_branch
    %15 = sbr.rel (0) target = $region5
  $region4: #{ae_forward.1} parent=0 // pred_region
    _
  $region5: #{ae_forward.1} parent=0 // pred_fallthru
    _
  // Predicated region
  $region6: #{ae_forward.1} parent=0 // pred_check
    _
  $region7: #{ae_forward.1} parent=0 // pred_check_branch
    %17 = sbr.rel (0) target = $region9
  $region8: #{ae_forward.1} parent=0 // pred_region
    _
  $region9: #{ae_forward.1} parent=0 // pred_fallthru
    _
  // Predicated region
  $region10: #{ae_forward.1} parent=0 // pred_check
    _
  $region11: #{ae_forward.1} parent=0 // pred_check_branch
    %19 = sbr.rel (0) target = $region13
  $region12: #{ae_forward.1} parent=0 // pred_region
    _
  $region13: #{ae_forward.1} parent=0 // pred_fallthru
    _
  // Predicated region
  $region14: #{ae_forward.1} parent=0 // pred_check
    _
  $region15: #{ae_forward.1} parent=0 // pred_check_branch
    %21 = sbr.rel (0) target = $region17
  $region16: #{ae_forward.1} parent=0 // pred_region
    _
  $region17: #{ae_forward.1} parent=0 // pred_fallthru
    _
  // Predicated region
  $region18: #{ae_forward.1} parent=0 // pred_check
    _
  $region19: #{ae_forward.1} parent=0 // pred_check_branch
    %23 = sbr.rel (0) target = $region21
  $region20: #{ae_forward.1} parent=0 // pred_region
    _
  $region21: #{ae_forward.1} parent=0 // pred_fallthru
    _
  // Predicated region
  $region22: #{ae_forward.1} parent=0 // pred_check
    _
  $region23: #{ae_forward.1} parent=0 // pred_check_branch
    %25 = sbr.rel (0) target = $region25
  $region24: #{ae_forward.1} parent=0 // pred_region
    _
  $region25: #{ae_forward.1} parent=0 // pred_fallthru
    _
  // Predicated region
  $region26: #{ae_forward.1} parent=0 // pred_check
    _
  $region27: #{ae_forward.1} parent=0 // pred_check_branch
    %27 = sbr.rel (0) target = $region29
  $region28: #{ae_forward.1} parent=0 // pred_region
    _
  $region29: #{ae_forward.1} parent=0 // pred_fallthru
    _
  // Predicated region
  $region30: #{ae_forward.1} parent=0 // pred_check
    _
  $region31: #{ae_forward.1} parent=0 // pred_check_branch
    %29 = sbr.rel (0) target = $region33
  $region32: #{ae_forward.1} parent=0 // pred_region
    _
  $region33: #{ae_forward.1} parent=0 // pred_fallthru
    _
  // Predicated region
  $region34: #{ae_forward.1} parent=0 // pred_check
    _
  $region35: #{ae_forward.1} parent=0 // pred_check_branch
    %31 = sbr.rel (0) target = $region37
  $region36: #{ae_forward.1} parent=0 // pred_region
    _
  $region37: #{ae_forward.1} parent=0 // pred_fallthru
    _
  %v33 = vld [vmem:[%s0] sm:$0xff]
  %v34 = vld [vmem:[%s0 + $0x8] sm:$0xff]
  %v35 = vld [vmem:[%s0 + $0x10] sm:$0xff]
  %v36 = vld [vmem:[%s0 + $0x18] sm:$0xff]
  %v37 = vld [vmem:[%s0 + $0x20] sm:$0xff]
  %v38 = vld [vmem:[%s0 + $0x28] sm:$0xff]
  %v39 = vld [vmem:[%s1] sm:$0xf]
  %v40 = vld [vmem:[%s1 + $0x4] sm:$0xf]
  %v41 = vld [vmem:[%s1 + $0x8] sm:$0xf]
  %v42 = vld [vmem:[%s1 + $0xc] sm:$0xf]
  %v43 = vld [vmem:[%s1 + $0x10] sm:$0xf]
  %v44 = vld [vmem:[%s1 + $0x14] sm:$0xf]
  %v45 = vld [vmem:[%s1 + $0x18] sm:$0xf]
  %v46 = vld [vmem:[%s1 + $0x1c] sm:$0xf]
  %v47 = vld [vmem:[%s1 + $0x20] sm:$0xf]
  %v48 = vld [vmem:[%s1 + $0x24] sm:$0xf]
  %v49 = vld [vmem:[%s1 + $0x28] sm:$0xf]
  %v50 = vld [vmem:[%s1 + $0x2c] sm:$0xf]
  %v51 = vld [vmem:[%s1 + $0x30] sm:$0xf]
  %v52 = vld [vmem:[%s1 + $0x34] sm:$0xf]
  %v53 = vld [vmem:[%s1 + $0x38] sm:$0xf]
  %v54 = vld [vmem:[%s1 + $0x3c] sm:$0xf]
  %v55 = vld [vmem:[%s1 + $0x40] sm:$0xf]
  %v56 = vld [vmem:[%s1 + $0x44] sm:$0xf]
  %v57 = vld [vmem:[%s1 + $0x48] sm:$0xf]
  %v58 = vld [vmem:[%s1 + $0x4c] sm:$0xf]
  %v59 = vld [vmem:[%s1 + $0x50] sm:$0xf]
  %v60 = vld [vmem:[%s1 + $0x54] sm:$0xf]
  %v61 = vld [vmem:[%s1 + $0x58] sm:$0xf]
  %v62 = vld [vmem:[%s1 + $0x5c] sm:$0xf]
  %v63 = vld [vmem:[%s1 + $0x60] sm:$0xf]
  %v64 = vld [vmem:[%s1 + $0x64] sm:$0xf]
  %v65 = vld [vmem:[%s1 + $0x68] sm:$0xf]
  %v66 = vld [vmem:[%s1 + $0x6c] sm:$0xf]
  %v67 = vld [vmem:[%s1 + $0x70] sm:$0xf]
  %v68 = vld [vmem:[%s1 + $0x74] sm:$0xf]
  %v69 = vld [vmem:[%s1 + $0x78] sm:$0xf]
  %v70 = vld [vmem:[%s1 + $0x7c] sm:$0xf]
  %v71 = vld [vmem:[%s2] sm:$0x1]
  %v73 = vlaneseq
  %v74 = vshrl.u32 %v73, 7
  %v75 = vsub.s32 0, %v74
  %v76 = vrot.slane %v71, %v75
  %v84 = vunpack.c.l.b16 %v33
  %v85 = vunpack.c.h.b16 %v33
  %v86 = vunpack.c.l.b16 %v34
  %v87 = vunpack.c.h.b16 %v34
  %v88 = vunpack.c.l.b16 %v35
  %v89 = vunpack.c.h.b16 %v35
  %v90 = vunpack.c.l.b16 %v36
  %v91 = vunpack.c.h.b16 %v36
  %v92 = vunpack.c.l.b16 %v37
  %v93 = vunpack.c.h.b16 %v37
  %v94 = vunpack.c.l.b16 %v38
  %v95 = vunpack.c.h.b16 %v38
  %v96 = vpack.c.b16 %v86, %v84
  %v97 = vpack.c.b16 %v87, %v85
  %v98 = vpack.c.b16 %v90, %v88
  %v99 = vpack.c.b16 %v91, %v89
  %v100 = vpack.c.b16 %v94, %v92
  %v101 = vpack.c.b16 %v95, %v93
  %v140 = vunpack.c.l.b16 %v39
  %v141 = vunpack.c.l.b16 %v40
  %v142 = vunpack.c.l.b16 %v41
  %v143 = vunpack.c.l.b16 %v42
  %v144 = vunpack.c.l.b16 %v43
  %v145 = vunpack.c.l.b16 %v44
  %v146 = vunpack.c.l.b16 %v45
  %v147 = vunpack.c.l.b16 %v46
  %v148 = vunpack.c.l.b16 %v47
  %v149 = vunpack.c.l.b16 %v48
  %v150 = vunpack.c.l.b16 %v49
  %v151 = vunpack.c.l.b16 %v50
  %v152 = vunpack.c.l.b16 %v51
  %v153 = vunpack.c.l.b16 %v52
  %v154 = vunpack.c.l.b16 %v53
  %v155 = vunpack.c.l.b16 %v54
  %v156 = vunpack.c.l.b16 %v55
  %v157 = vunpack.c.l.b16 %v56
  %v158 = vunpack.c.l.b16 %v57
  %v159 = vunpack.c.l.b16 %v58
  %v160 = vunpack.c.l.b16 %v59
  %v161 = vunpack.c.l.b16 %v60
  %v162 = vunpack.c.l.b16 %v61
  %v163 = vunpack.c.l.b16 %v62
  %v164 = vunpack.c.l.b16 %v63
  %v165 = vunpack.c.l.b16 %v64
  %v166 = vunpack.c.l.b16 %v65
  %v167 = vunpack.c.l.b16 %v66
  %v168 = vunpack.c.l.b16 %v67
  %v169 = vunpack.c.l.b16 %v68
  %v170 = vunpack.c.l.b16 %v69
  %v171 = vunpack.c.l.b16 %v70
  %v172 = vpack.c.b16 %v141, %v140
  %v173 = vpack.c.b16 %v143, %v142
  %v174 = vpack.c.b16 %v145, %v144
  %v175 = vpack.c.b16 %v147, %v146
  %v176 = vpack.c.b16 %v149, %v148
  %v177 = vpack.c.b16 %v151, %v150
  %v178 = vpack.c.b16 %v153, %v152
  %v179 = vpack.c.b16 %v155, %v154
  %v180 = vpack.c.b16 %v157, %v156
  %v181 = vpack.c.b16 %v159, %v158
  %v182 = vpack.c.b16 %v161, %v160
  %v183 = vpack.c.b16 %v163, %v162
  %v184 = vpack.c.b16 %v165, %v164
  %v185 = vpack.c.b16 %v167, %v166
  %v186 = vpack.c.b16 %v169, %v168
  %v187 = vpack.c.b16 %v171, %v170
  %204 = vmatprep.subr.bf16.mxu0 0
  %205 = vmatpush1.bf16.msra.mxu0 %v172
  %206 = vmatprep.subr.bf16.mxu0 0
  %207 = vmatpush1.bf16.msra.mxu0 %v173
  %208 = vmatprep.subr.bf16.mxu0 0
  %209 = vmatpush1.bf16.msra.mxu0 %v174
  %210 = vmatprep.subr.bf16.mxu0 0
  %211 = vmatpush1.bf16.msra.mxu0 %v175
  %212 = vmatprep.subr.bf16.mxu0 0
  %213 = vmatpush1.bf16.msra.mxu0 %v176
  %214 = vmatprep.subr.bf16.mxu0 0
  %215 = vmatpush1.bf16.msra.mxu0 %v177
  %216 = vmatprep.subr.bf16.mxu0 0
  %217 = vmatpush1.bf16.msra.mxu0 %v178
  %218 = vmatprep.subr.bf16.mxu0 0
  %219 = vmatpush1.bf16.msra.mxu0 %v179
  %220 = vmatprep.subr.bf16.mxu0 0
  %221 = vmatpush1.bf16.msra.mxu0 %v180
  %222 = vmatprep.subr.bf16.mxu0 0
  %223 = vmatpush1.bf16.msra.mxu0 %v181
  %224 = vmatprep.subr.bf16.mxu0 0
  %225 = vmatpush1.bf16.msra.mxu0 %v182
  %226 = vmatprep.subr.bf16.mxu0 0
  %227 = vmatpush1.bf16.msra.mxu0 %v183
  %228 = vmatprep.subr.bf16.mxu0 0
  %229 = vmatpush1.bf16.msra.mxu0 %v184
  %230 = vmatprep.subr.bf16.mxu0 0
  %231 = vmatpush1.bf16.msra.mxu0 %v185
  %232 = vmatprep.subr.bf16.mxu0 0
  %233 = vmatpush1.bf16.msra.mxu0 %v186
  %234 = vmatprep.subr.bf16.mxu0 0
  %235 = vmatpush1.bf16.msra.mxu0 %v187
  %236 = vmatprep.mubr.bf16.mxu0 %v97
  %237 = vmatmul.mubr.bf16.gmra.mrb[0].mxu0 %v96
  %v238 = vpop.f32.mrb[0].mxu0
  %v239 = vadd.f32 %v76, %v238
  %v240 = vpop.f32.mrb[0].mxu0
  %v241 = vpop.f32.mrb[0].mxu0
  %v242 = vadd.f32 %v76, %v241
  %v243 = vpop.f32.mrb[0].mxu0
  %244 = vmatprep.mubr.bf16.mxu0 %v99
  %245 = vmatmul.mubr.bf16.gmra.mrb[0].mxu0 %v98
  %v246 = vpop.f32.mrb[0].mxu0
  %v247 = vadd.f32 %v76, %v246
  %v248 = vpop.f32.mrb[0].mxu0
  %v249 = vpop.f32.mrb[0].mxu0
  %v250 = vadd.f32 %v76, %v249
  %v251 = vpop.f32.mrb[0].mxu0
  %252 = vmatprep.mubr.bf16.mxu0 %v101
  %253 = vmatmul.mubr.bf16.gmra.mrb[0].mxu0 %v100
  %v254 = vpop.f32.mrb[0].mxu0
  %v255 = vadd.f32 %v76, %v254
  %v256 = vpop.f32.mrb[0].mxu0
  %v257 = vpop.f32.mrb[0].mxu0
  %v258 = vadd.f32 %v76, %v257
  %v259 = vpop.f32.mrb[0].mxu0
  %260 = vdwg.mxu0
  %v261 = vmax.f32 %v239, 0.0
  %v262 = vmax.f32 %v242, 0.0
  %v263 = vmax.f32 %v247, 0.0
  %v264 = vmax.f32 %v250, 0.0
  %v265 = vmax.f32 %v255, 0.0
  %v266 = vmax.f32 %v258, 0.0
  %v267 = vpack.c.bf16 %v262, %v261
  %v268 = vpack.c.bf16 %v264, %v263
  %v269 = vpack.c.bf16 %v266, %v265
  %v270 = vld [vmem:[%s3] sm:$0xf]
  %v271 = vld [vmem:[%s3 + $0x4] sm:$0xf]
  %v272 = vld [vmem:[%s3 + $0x8] sm:$0xf]
  %v273 = vld [vmem:[%s3 + $0xc] sm:$0xf]
  %v274 = vld [vmem:[%s3 + $0x10] sm:$0xf]
  %v275 = vld [vmem:[%s3 + $0x14] sm:$0xf]
  %v276 = vld [vmem:[%s3 + $0x18] sm:$0xf]
  %v277 = vld [vmem:[%s3 + $0x1c] sm:$0xf]
  %v278 = vld [vmem:[%s3 + $0x20] sm:$0xf]
  %v279 = vld [vmem:[%s3 + $0x24] sm:$0xf]
  %v280 = vld [vmem:[%s3 + $0x28] sm:$0xf]
  %v281 = vld [vmem:[%s3 + $0x2c] sm:$0xf]
  %v282 = vld [vmem:[%s3 + $0x30] sm:$0xf]
  %v283 = vld [vmem:[%s3 + $0x34] sm:$0xf]
  %v284 = vld [vmem:[%s3 + $0x38] sm:$0xf]
  %v285 = vld [vmem:[%s3 + $0x3c] sm:$0xf]
  %v286 = vld [vmem:[%s4] sm:$0x1]
  %v288 = vlaneseq
  %v289 = vshrl.u32 %v288, 7
  %v290 = vsub.s32 0, %v289
  %v291 = vrot.slane %v286, %v290
  %v309 = vunpack.c.l.b16 %v270
  %v310 = vunpack.c.l.b16 %v271
  %v311 = vunpack.c.l.b16 %v272
  %v312 = vunpack.c.l.b16 %v273
  %v313 = vunpack.c.l.b16 %v274
  %v314 = vunpack.c.l.b16 %v275
  %v315 = vunpack.c.l.b16 %v276
  %v316 = vunpack.c.l.b16 %v277
  %v317 = vunpack.c.l.b16 %v278
  %v318 = vunpack.c.l.b16 %v279
  %v319 = vunpack.c.l.b16 %v280
  %v320 = vunpack.c.l.b16 %v281
  %v321 = vunpack.c.l.b16 %v282
  %v322 = vunpack.c.l.b16 %v283
  %v323 = vunpack.c.l.b16 %v284
  %v324 = vunpack.c.l.b16 %v285
  %v325 = vpack.c.b16 %v310, %v309
  %v326 = vpack.c.b16 %v312, %v311
  %v327 = vpack.c.b16 %v314, %v313
  %v328 = vpack.c.b16 %v316, %v315
  %v329 = vpack.c.b16 %v318, %v317
  %v330 = vpack.c.b16 %v320, %v319
  %v331 = vpack.c.b16 %v322, %v321
  %v332 = vpack.c.b16 %v324, %v323
  %341 = vmatprep.subr.bf16.mxu0 0
  %342 = vmatpush1.bf16.msra.mxu0 %v325
  %343 = vmatprep.subr.bf16.mxu0 0
  %344 = vmatpush1.bf16.msra.mxu0 %v326
  %345 = vmatprep.subr.bf16.mxu0 0
  %346 = vmatpush1.bf16.msra.mxu0 %v327
  %347 = vmatprep.subr.bf16.mxu0 0
  %348 = vmatpush1.bf16.msra.mxu0 %v328
  %349 = vmatprep.subr.bf16.mxu0 0
  %350 = vmatpush1.bf16.msra.mxu0 %v329
  %351 = vmatprep.subr.bf16.mxu0 0
  %352 = vmatpush1.bf16.msra.mxu0 %v330
  %353 = vmatprep.subr.bf16.mxu0 0
  %354 = vmatpush1.bf16.msra.mxu0 %v331
  %355 = vmatprep.subr.bf16.mxu0 0
  %356 = vmatpush1.bf16.msra.mxu0 %v332
  %357 = vmatprep.subr.bf16.mxu0 0
  %358 = vmatpush1.bf16.msra.mxu0 0
  %359 = vmatprep.subr.bf16.mxu0 0
  %360 = vmatpush1.bf16.msra.mxu0 0
  %361 = vmatprep.subr.bf16.mxu0 0
  %362 = vmatpush1.bf16.msra.mxu0 0
  %363 = vmatprep.subr.bf16.mxu0 0
  %364 = vmatpush1.bf16.msra.mxu0 0
  %365 = vmatprep.subr.bf16.mxu0 0
  %366 = vmatpush1.bf16.msra.mxu0 0
  %367 = vmatprep.subr.bf16.mxu0 0
  %368 = vmatpush1.bf16.msra.mxu0 0
  %369 = vmatprep.subr.bf16.mxu0 0
  %370 = vmatpush1.bf16.msra.mxu0 0
  %371 = vmatprep.subr.bf16.mxu0 0
  %372 = vmatpush1.bf16.msra.mxu0 0
  %373 = vmatprep.mubr.bf16.mxu0 0
  %374 = vmatmul.mubr.bf16.gmra.mrb[0].mxu0 %v267
  %v375 = vpop.f32.mrb[0].mxu0
  %v376 = vadd.f32 %v291, %v375
  %v377 = vpop.f32.mrb[0].mxu0
  %v378 = vpop.f32.mrb[0].mxu0
  %v379 = vadd.f32 %v291, %v378
  %v380 = vpop.f32.mrb[0].mxu0
  %381 = vmatprep.mubr.bf16.mxu0 0
  %382 = vmatmul.mubr.bf16.gmra.mrb[0].mxu0 %v268
  %v383 = vpop.f32.mrb[0].mxu0
  %v384 = vadd.f32 %v291, %v383
  %v385 = vpop.f32.mrb[0].mxu0
  %v386 = vpop.f32.mrb[0].mxu0
  %v387 = vadd.f32 %v291, %v386
  %v388 = vpop.f32.mrb[0].mxu0
  %389 = vmatprep.mubr.bf16.mxu0 0
  %390 = vmatmul.mubr.bf16.gmra.mrb[0].mxu0 %v269
  %v391 = vpop.f32.mrb[0].mxu0
  %v392 = vadd.f32 %v291, %v391
  %v393 = vpop.f32.mrb[0].mxu0
  %v394 = vpop.f32.mrb[0].mxu0
  %v395 = vadd.f32 %v291, %v394
  %v396 = vpop.f32.mrb[0].mxu0
  %397 = vdwg.mxu0
  %v398 = vmax.f32 %v376, 0.0
  %v399 = vmax.f32 %v379, 0.0
  %v400 = vmax.f32 %v384, 0.0
  %v401 = vmax.f32 %v387, 0.0
  %v402 = vmax.f32 %v392, 0.0
  %v403 = vmax.f32 %v395, 0.0
  %v404 = vpack.c.bf16 %v399, %v398
  %v405 = vpack.c.bf16 %v401, %v400
  %v406 = vpack.c.bf16 %v403, %v402
  %v407 = vld [vmem:[%s5] sm:$0xf]
  %v408 = vld [vmem:[%s5 + $0x4] sm:$0xf]
  %v409 = vld [vmem:[%s5 + $0x8] sm:$0xf]
  %v410 = vld [vmem:[%s5 + $0xc] sm:$0xf]
  %v411 = vld [vmem:[%s5 + $0x10] sm:$0xf]
  %v412 = vld [vmem:[%s5 + $0x14] sm:$0xf]
  %v413 = vld [vmem:[%s5 + $0x18] sm:$0xf]
  %v414 = vld [vmem:[%s5 + $0x1c] sm:$0xf]
  %v415 = vld [vmem:[%s5 + $0x20] sm:$0xf]
  %v416 = vld [vmem:[%s5 + $0x24] sm:$0xf]
  %v417 = vld [vmem:[%s5 + $0x28] sm:$0xf]
  %v418 = vld [vmem:[%s5 + $0x2c] sm:$0xf]
  %v419 = vld [vmem:[%s5 + $0x30] sm:$0xf]
  %v420 = vld [vmem:[%s5 + $0x34] sm:$0xf]
  %v421 = vld [vmem:[%s5 + $0x38] sm:$0xf]
  %v422 = vld [vmem:[%s5 + $0x3c] sm:$0xf]
  %v423 = vld [vmem:[%s6] sm:$0x1]
  %v425 = vlaneseq
  %v426 = vshrl.u32 %v425, 7
  %v427 = vsub.s32 0, %v426
  %v428 = vrot.slane %v423, %v427
  %v446 = vunpack.c.l.b16 %v407
  %v447 = vunpack.c.l.b16 %v408
  %v448 = vunpack.c.l.b16 %v409
  %v449 = vunpack.c.l.b16 %v410
  %v450 = vunpack.c.l.b16 %v411
  %v451 = vunpack.c.l.b16 %v412
  %v452 = vunpack.c.l.b16 %v413
  %v453 = vunpack.c.l.b16 %v414
  %v454 = vunpack.c.l.b16 %v415
  %v455 = vunpack.c.l.b16 %v416
  %v456 = vunpack.c.l.b16 %v417
  %v457 = vunpack.c.l.b16 %v418
  %v458 = vunpack.c.l.b16 %v419
  %v459 = vunpack.c.l.b16 %v420
  %v460 = vunpack.c.l.b16 %v421
  %v461 = vunpack.c.l.b16 %v422
  %v462 = vpack.c.b16 %v447, %v446
  %v463 = vpack.c.b16 %v449, %v448
  %v464 = vpack.c.b16 %v451, %v450
  %v465 = vpack.c.b16 %v453, %v452
  %v466 = vpack.c.b16 %v455, %v454
  %v467 = vpack.c.b16 %v457, %v456
  %v468 = vpack.c.b16 %v459, %v458
  %v469 = vpack.c.b16 %v461, %v460
  %478 = vmatprep.subr.bf16.mxu0 0
  %479 = vmatpush1.bf16.msra.mxu0 %v462
  %480 = vmatprep.subr.bf16.mxu0 0
  %481 = vmatpush1.bf16.msra.mxu0 %v463
  %482 = vmatprep.subr.bf16.mxu0 0
  %483 = vmatpush1.bf16.msra.mxu0 %v464
  %484 = vmatprep.subr.bf16.mxu0 0
  %485 = vmatpush1.bf16.msra.mxu0 %v465
  %486 = vmatprep.subr.bf16.mxu0 0
  %487 = vmatpush1.bf16.msra.mxu0 %v466
  %488 = vmatprep.subr.bf16.mxu0 0
  %489 = vmatpush1.bf16.msra.mxu0 %v467
  %490 = vmatprep.subr.bf16.mxu0 0
  %491 = vmatpush1.bf16.msra.mxu0 %v468
  %492 = vmatprep.subr.bf16.mxu0 0
  %493 = vmatpush1.bf16.msra.mxu0 %v469
  %494 = vmatprep.subr.bf16.mxu0 0
  %495 = vmatpush1.bf16.msra.mxu0 0
  %496 = vmatprep.subr.bf16.mxu0 0
  %497 = vmatpush1.bf16.msra.mxu0 0
  %498 = vmatprep.subr.bf16.mxu0 0
  %499 = vmatpush1.bf16.msra.mxu0 0
  %500 = vmatprep.subr.bf16.mxu0 0
  %501 = vmatpush1.bf16.msra.mxu0 0
  %502 = vmatprep.subr.bf16.mxu0 0
  %503 = vmatpush1.bf16.msra.mxu0 0
  %504 = vmatprep.subr.bf16.mxu0 0
  %505 = vmatpush1.bf16.msra.mxu0 0
  %506 = vmatprep.subr.bf16.mxu0 0
  %507 = vmatpush1.bf16.msra.mxu0 0
  %508 = vmatprep.subr.bf16.mxu0 0
  %509 = vmatpush1.bf16.msra.mxu0 0
  %510 = vmatprep.mubr.bf16.mxu0 0
  %511 = vmatmul.mubr.bf16.gmra.mrb[0].mxu0 %v404
  %v512 = vpop.f32.mrb[0].mxu0
  %v513 = vadd.f32 %v428, %v512
  %v514 = vpop.f32.mrb[0].mxu0
  %v515 = vpop.f32.mrb[0].mxu0
  %v516 = vadd.f32 %v428, %v515
  %v517 = vpop.f32.mrb[0].mxu0
  %518 = vmatprep.mubr.bf16.mxu0 0
  %519 = vmatmul.mubr.bf16.gmra.mrb[0].mxu0 %v405
  %v520 = vpop.f32.mrb[0].mxu0
  %v521 = vadd.f32 %v428, %v520
  %v522 = vpop.f32.mrb[0].mxu0
  %v523 = vpop.f32.mrb[0].mxu0
  %v524 = vadd.f32 %v428, %v523
  %v525 = vpop.f32.mrb[0].mxu0
  %526 = vmatprep.mubr.bf16.mxu0 0
  %527 = vmatmul.mubr.bf16.gmra.mrb[0].mxu0 %v406
  %v528 = vpop.f32.mrb[0].mxu0
  %v529 = vadd.f32 %v428, %v528
  %v530 = vpop.f32.mrb[0].mxu0
  %v531 = vpop.f32.mrb[0].mxu0
  %v532 = vadd.f32 %v428, %v531
  %v533 = vpop.f32.mrb[0].mxu0
  %534 = vdwg.mxu0
  %v535 = vmax.f32 %v513, 0.0
  %v536 = vmax.f32 %v516, 0.0
  %v537 = vmax.f32 %v521, 0.0
  %v538 = vmax.f32 %v524, 0.0
  %v539 = vmax.f32 %v529, 0.0
  %v540 = vmax.f32 %v532, 0.0
  %v541 = vpack.c.bf16 %v536, %v535
  %v542 = vpack.c.bf16 %v538, %v537
  %v543 = vpack.c.bf16 %v540, %v539
  %v544 = vld [vmem:[%s7] sm:$0xff]
  %v545 = vld [vmem:[%s7 + $0x8] sm:$0xff]
  %v546 = vld [vmem:[%s7 + $0x10] sm:$0xff]
  %v547 = vld [vmem:[%s7 + $0x18] sm:$0xff]
  %v548 = vld [vmem:[%s7 + $0x20] sm:$0xff]
  %v549 = vld [vmem:[%s7 + $0x28] sm:$0xff]
  %v550 = vld [vmem:[%s7 + $0x30] sm:$0xff]
  %v551 = vld [vmem:[%s7 + $0x38] sm:$0xff]
  %v552 = vld [vmem:[%s7 + $0x40] sm:$0xff]
  %v553 = vld [vmem:[%s7 + $0x48] sm:$0xff]
  %v554 = vld [vmem:[%s7 + $0x50] sm:$0xff]
  %v555 = vld [vmem:[%s7 + $0x58] sm:$0xff]
  %v556 = vld [vmem:[%s7 + $0x60] sm:$0xff]
  %v557 = vld [vmem:[%s7 + $0x68] sm:$0xff]
  %v558 = vld [vmem:[%s7 + $0x70] sm:$0xff]
  %v559 = vld [vmem:[%s7 + $0x78] sm:$0xff]
  %v560 = vld [vmem:[%s8] sm:$0x3]
  %v562 = vlaneseq
  %v563 = vshrl.u32 %v562, 7
  %v564 = vsub.s32 0, %v563
  %v565 = vrot.slane %v560, %v564
  %v566 = vlaneseq
  %v567 = vshrl.u32 %v566, 7
  %v568 = vsub.s32 1, %v567
  %v569 = vrot.slane %v560, %v568
  %v588 = vunpack.c.l.b16 %v544
  %v589 = vunpack.c.h.b16 %v544
  %v590 = vunpack.c.l.b16 %v545
  %v591 = vunpack.c.h.b16 %v545
  %v592 = vunpack.c.l.b16 %v546
  %v593 = vunpack.c.h.b16 %v546
  %v594 = vunpack.c.l.b16 %v547
  %v595 = vunpack.c.h.b16 %v547
  %v596 = vunpack.c.l.b16 %v548
  %v597 = vunpack.c.h.b16 %v548
  %v598 = vunpack.c.l.b16 %v549
  %v599 = vunpack.c.h.b16 %v549
  %v600 = vunpack.c.l.b16 %v550
  %v601 = vunpack.c.h.b16 %v550
  %v602 = vunpack.c.l.b16 %v551
  %v603 = vunpack.c.h.b16 %v551
  %v604 = vunpack.c.l.b16 %v552
  %v605 = vunpack.c.h.b16 %v552
  %v606 = vunpack.c.l.b16 %v553
  %v607 = vunpack.c.h.b16 %v553
  %v608 = vunpack.c.l.b16 %v554
  %v609 = vunpack.c.h.b16 %v554
  %v610 = vunpack.c.l.b16 %v555
  %v611 = vunpack.c.h.b16 %v555
  %v612 = vunpack.c.l.b16 %v556
  %v613 = vunpack.c.h.b16 %v556
  %v614 = vunpack.c.l.b16 %v557
  %v615 = vunpack.c.h.b16 %v557
  %v616 = vunpack.c.l.b16 %v558
  %v617 = vunpack.c.h.b16 %v558
  %v618 = vunpack.c.l.b16 %v559
  %v619 = vunpack.c.h.b16 %v559
  %v620 = vpack.c.b16 %v590, %v588
  %v621 = vpack.c.b16 %v591, %v589
  %v622 = vpack.c.b16 %v594, %v592
  %v623 = vpack.c.b16 %v595, %v593
  %v624 = vpack.c.b16 %v598, %v596
  %v625 = vpack.c.b16 %v599, %v597
  %v626 = vpack.c.b16 %v602, %v600
  %v627 = vpack.c.b16 %v603, %v601
  %v628 = vpack.c.b16 %v606, %v604
  %v629 = vpack.c.b16 %v607, %v605
  %v630 = vpack.c.b16 %v610, %v608
  %v631 = vpack.c.b16 %v611, %v609
  %v632 = vpack.c.b16 %v614, %v612
  %v633 = vpack.c.b16 %v615, %v613
  %v634 = vpack.c.b16 %v618, %v616
  %v635 = vpack.c.b16 %v619, %v617
  %652 = vmatprep.subr.bf16.mxu0 %v621
  %653 = vmatpush1.bf16.msra.mxu0 %v620
  %654 = vmatprep.subr.bf16.mxu0 %v623
  %655 = vmatpush1.bf16.msra.mxu0 %v622
  %656 = vmatprep.subr.bf16.mxu0 %v625
  %657 = vmatpush1.bf16.msra.mxu0 %v624
  %658 = vmatprep.subr.bf16.mxu0 %v627
  %659 = vmatpush1.bf16.msra.mxu0 %v626
  %660 = vmatprep.subr.bf16.mxu0 %v629
  %661 = vmatpush1.bf16.msra.mxu0 %v628
  %662 = vmatprep.subr.bf16.mxu0 %v631
  %663 = vmatpush1.bf16.msra.mxu0 %v630
  %664 = vmatprep.subr.bf16.mxu0 %v633
  %665 = vmatpush1.bf16.msra.mxu0 %v632
  %666 = vmatprep.subr.bf16.mxu0 %v635
  %667 = vmatpush1.bf16.msra.mxu0 %v634
  %668 = vmatprep.subr.bf16.mxu0 0
  %669 = vmatpush1.bf16.msra.mxu0 0
  %670 = vmatprep.subr.bf16.mxu0 0
  %671 = vmatpush1.bf16.msra.mxu0 0
  %672 = vmatprep.subr.bf16.mxu0 0
  %673 = vmatpush1.bf16.msra.mxu0 0
  %674 = vmatprep.subr.bf16.mxu0 0
  %675 = vmatpush1.bf16.msra.mxu0 0
  %676 = vmatprep.subr.bf16.mxu0 0
  %677 = vmatpush1.bf16.msra.mxu0 0
  %678 = vmatprep.subr.bf16.mxu0 0
  %679 = vmatpush1.bf16.msra.mxu0 0
  %680 = vmatprep.subr.bf16.mxu0 0
  %681 = vmatpush1.bf16.msra.mxu0 0
  %682 = vmatprep.subr.bf16.mxu0 0
  %683 = vmatpush1.bf16.msra.mxu0 0
  %684 = vmatprep.mubr.bf16.mxu0 0
  %685 = vmatmul.mubr.bf16.gmra.mrb[0].mxu0 %v541
  %v686 = vpop.f32.mrb[0].mxu0
  %v687 = vadd.f32 %v565, %v686
  %v688 = vpop.f32.mrb[0].mxu0
  %v689 = vadd.f32 %v569, %v688
  %v690 = vpop.f32.mrb[0].mxu0
  %v691 = vadd.f32 %v565, %v690
  %v692 = vpop.f32.mrb[0].mxu0
  %v693 = vadd.f32 %v569, %v692
  %694 = vmatprep.mubr.bf16.mxu0 0
  %695 = vmatmul.mubr.bf16.gmra.mrb[0].mxu0 %v542
  %v696 = vpop.f32.mrb[0].mxu0
  %v697 = vadd.f32 %v565, %v696
  %v698 = vpop.f32.mrb[0].mxu0
  %v699 = vadd.f32 %v569, %v698
  %v700 = vpop.f32.mrb[0].mxu0
  %v701 = vadd.f32 %v565, %v700
  %v702 = vpop.f32.mrb[0].mxu0
  %v703 = vadd.f32 %v569, %v702
  %704 = vmatprep.mubr.bf16.mxu0 0
  %705 = vmatmul.mubr.bf16.gmra.mrb[0].mxu0 %v543
  %v706 = vpop.f32.mrb[0].mxu0
  %v707 = vadd.f32 %v565, %v706
  %v708 = vpop.f32.mrb[0].mxu0
  %v709 = vadd.f32 %v569, %v708
  %v710 = vpop.f32.mrb[0].mxu0
  %v711 = vadd.f32 %v565, %v710
  %v712 = vpop.f32.mrb[0].mxu0
  %v713 = vadd.f32 %v569, %v712
  %714 = vdwg.mxu0
  %v715 = vmax.f32 %v687, 0.0
  %v716 = vmax.f32 %v689, 0.0
  %v717 = vmax.f32 %v691, 0.0
  %v718 = vmax.f32 %v693, 0.0
  %v719 = vmax.f32 %v697, 0.0
  %v720 = vmax.f32 %v699, 0.0
  %v721 = vmax.f32 %v701, 0.0
  %v722 = vmax.f32 %v703, 0.0
  %v723 = vmax.f32 %v707, 0.0
  %v724 = vmax.f32 %v709, 0.0
  %v725 = vmax.f32 %v711, 0.0
  %v726 = vmax.f32 %v713, 0.0
  %v727 = vpack.c.bf16 %v717, %v715
  %v728 = vpack.c.bf16 %v718, %v716
  %v729 = vpack.c.bf16 %v721, %v719
  %v730 = vpack.c.bf16 %v722, %v720
  %v731 = vpack.c.bf16 %v725, %v723
  %v732 = vpack.c.bf16 %v726, %v724
  %v739 = vunpack.c.l.b16 %v727
  %v740 = vunpack.c.l.b16 %v728
  %v741 = vunpack.c.h.b16 %v727
  %v742 = vunpack.c.h.b16 %v728
  %v743 = vunpack.c.l.b16 %v729
  %v744 = vunpack.c.l.b16 %v730
  %v745 = vunpack.c.h.b16 %v729
  %v746 = vunpack.c.h.b16 %v730
  %v747 = vunpack.c.l.b16 %v731
  %v748 = vunpack.c.l.b16 %v732
  %v749 = vunpack.c.h.b16 %v731
  %v750 = vunpack.c.h.b16 %v732
  %v751 = vpack.c.b16 %v740, %v739
  %v752 = vpack.c.b16 %v742, %v741
  %v753 = vpack.c.b16 %v744, %v743
  %v754 = vpack.c.b16 %v746, %v745
  %v755 = vpack.c.b16 %v748, %v747
  %v756 = vpack.c.b16 %v750, %v749
  %763 = vst [vmem:[%s9] sm:$0xff] %v751
  %764 = vst [vmem:[%s9 + $0x8] sm:$0xff] %v752
  %765 = vst [vmem:[%s9 + $0x10] sm:$0xff] %v753
  %766 = vst [vmem:[%s9 + $0x18] sm:$0xff] %v754
  %767 = vst [vmem:[%s9 + $0x20] sm:$0xff] %v755
  %768 = vst [vmem:[%s9 + $0x28] sm:$0xff] %v756
  // Predicated region
  $region38: #{ae_forward.1} parent=0 // pred_check
    _
  $region39: #{ae_forward.1} parent=0 // pred_check_branch
    %770 = sbr.rel (0) target = $region41
  $region40: #{ae_forward.1} parent=0 // pred_region
    _
  $region41: #{ae_forward.1} parent=0 // pred_fallthru
    _
  // Predicated region
  $region42: #{ae_forward.1} parent=0 // pred_check
    _
  $region43: #{ae_forward.1} parent=0 // pred_check_branch
    %772 = sbr.rel (0) target = $region45
  $region44: #{ae_forward.1} parent=0 // pred_region
    _
  $region45: #{ae_forward.1} parent=0 // pred_fallthru
    _

</llo_original>
